<compile_context>
chip_gen: v7x
topology: tpu7x:2x2x1
jax: 0.10.0
libtpu: 0.0.40
codegen_flags: <defaults>
</compile_context>

<pallas_src>
import math

import jax
import jax.numpy as jnp
from jax import lax
from jax.experimental import pallas as pl
from jax.experimental.pallas import tpu as pltpu


def _round_up(v, m):
    return ((v + m - 1) // m) * m


def _full_k_kernel(x_ref, w_ref, o_ref):
    # x_ref: (tm, K), w_ref: (tn, K)  ->  o_ref: (tm, tn).  Single MXU pass,
    # no accumulator scratch, no init/finalize branches.
    o_ref[...] = lax.dot_general(
        x_ref[...],
        w_ref[...],
        dimension_numbers=(((1,), (1,)), ((), ())),
        preferred_element_type=jnp.float32,
    ).astype(o_ref.dtype)


def _k_tiled_kernel(x_ref, w_ref, o_ref, acc_ref):
    # Fallback for very large in_dim. grid = (M//tm, O//tn, K//tk); K last.
    @pl.when(pl.program_id(2) == 0)
    def _():
        acc_ref[...] = jnp.zeros_like(acc_ref)

    acc_ref[...] += lax.dot_general(
        x_ref[...],
        w_ref[...],
        dimension_numbers=(((1,), (1,)), ((), ())),
        preferred_element_type=jnp.float32,
    )

    @pl.when(pl.program_id(2) == pl.num_programs(2) - 1)
    def _():
        o_ref[...] = acc_ref[...].astype(o_ref.dtype)


def last_unary_block(x, weight, *, tm=512, tn=512, tk=512,
                     max_single_k=2048, compute_dtype=None):
    """Forward of LastUnaryBlock: x @ weight.T (no bias).

    x:      (N, in_dim)      point features.
    weight: (out_dim, in_dim) exactly nn.Linear.weight (no transpose needed).
    compute_dtype: optionally cast inputs (e.g. jnp.bfloat16) for the 256^2 MXUs
                   on v6e/v7x; accumulation stays f32, output keeps x.dtype.
    """
    N, in_dim = x.shape
    out_dim, in_dim_w = weight.shape
    assert in_dim == in_dim_w, (in_dim, in_dim_w)
    out_dtype = x.dtype

    if compute_dtype is not None:
        x = x.astype(compute_dtype)
        weight = weight.astype(compute_dtype)

    # ---- tile sizes (lane-dense output, (8,128)-aligned blocks) ------------
    tn = min(tn, _round_up(out_dim, 128))
    tn = _round_up(tn, 128)
    o_pad = _round_up(out_dim, tn)

    tm = min(tm, _round_up(N, 8))
    tm = _round_up(tm, 8)
    m_pad = _round_up(N, tm)

    # v7x has 2 TensorCores: keep >= 2 blocks along the parallel axes so both
    # cores get a shard (harmless ~0.35us extra grid step on v5e/v6e).
    while (m_pad // tm) * (o_pad // tn) < 2 and tm >= 16:
        tm = _round_up(tm // 2, 8)
        m_pad = _round_up(N, tm)

    k_pad_full = _round_up(in_dim, 128)
    single_k = k_pad_full <= max_single_k
    if single_k:
        tk = k_pad_full
        k_pad = k_pad_full
    else:
        tk = _round_up(min(tk, k_pad_full), 128)
        k_pad = _round_up(in_dim, tk)

    # ---- zero-pad to tile multiples (zeros don't affect the dot product) ---
    if (m_pad, k_pad) != (N, in_dim):
        x = jnp.pad(x, ((0, m_pad - N), (0, k_pad - in_dim)))
    if (o_pad, k_pad) != (out_dim, in_dim):
        weight = jnp.pad(weight, ((0, o_pad - out_dim), (0, k_pad - in_dim)))

    if single_k:
        out = pl.pallas_call(
            _full_k_kernel,
            out_shape=jax.ShapeDtypeStruct((m_pad, o_pad), out_dtype),
            grid_spec=pltpu.PrefetchScalarGridSpec(
                num_scalar_prefetch=0,
                grid=(m_pad // tm, o_pad // tn),
                in_specs=[
                    pl.BlockSpec((tm, tk), lambda i, j: (i, 0)),
                    pl.BlockSpec((tn, tk), lambda i, j: (j, 0)),
                ],
                out_specs=pl.BlockSpec((tm, tn), lambda i, j: (i, j)),
            ),
            compiler_params=pltpu.CompilerParams(
                dimension_semantics=("parallel", "parallel")
            ),
        )(x, weight)
    else:
        out = pl.pallas_call(
            _k_tiled_kernel,
            out_shape=jax.ShapeDtypeStruct((m_pad, o_pad), out_dtype),
            grid_spec=pltpu.PrefetchScalarGridSpec(
                num_scalar_prefetch=0,
                grid=(m_pad // tm, o_pad // tn, k_pad // tk),
                in_specs=[
                    pl.BlockSpec((tm, tk), lambda i, j, k: (i, k)),
                    pl.BlockSpec((tn, tk), lambda i, j, k: (j, k)),
                ],
                out_specs=pl.BlockSpec((tm, tn), lambda i, j, k: (i, j)),
                scratch_shapes=[pltpu.VMEM((tm, tn), jnp.float32)],
            ),
            compiler_params=pltpu.CompilerParams(
                dimension_semantics=("parallel", "parallel", "arbitrary")
            ),
        )(x, weight)

    if (m_pad, o_pad) != (N, out_dim):
        out = out[:N, :out_dim]
    return out


if __name__ == "__main__":
    # Shapes implied by the module: x is a 2-D (num_points, in_dim) feature
    # tensor; weight is (out_dim, in_dim) like nn.Linear.weight (no bias).
    N, in_dim, out_dim = 256, 128, 128

    key = jax.random.PRNGKey(0)
    kx, kw = jax.random.split(key)

    x = jax.random.normal(kx, (N, in_dim), dtype=jnp.float32)

    # Deterministic nn.Linear default init: kaiming_uniform_(a=sqrt(5)) ->
    # U(-bound, bound) with bound = 1 / sqrt(in_dim).
    bound = 1.0 / math.sqrt(in_dim)
    weight = jax.random.uniform(
        kw, (out_dim, in_dim), dtype=jnp.float32, minval=-bound, maxval=bound
    )

    out = last_unary_block(x, weight)
    jax.block_until_ready(out)

    ref = x @ weight.T
    assert out.shape == (N, out_dim)
    assert jnp.allclose(out, ref, atol=1e-4, rtol=1e-4)

    # Also exercise the padding path (non-tile-multiple shapes) to make sure
    # no remainder rows/cols are dropped.
    N2, in2, out2 = 200, 96, 40
    x2 = jax.random.normal(kx, (N2, in2), dtype=jnp.float32)
    w2 = jax.random.uniform(
        kw, (out2, in2), dtype=jnp.float32,
        minval=-1.0 / math.sqrt(in2), maxval=1.0 / math.sqrt(in2),
    )
    out2_arr = last_unary_block(x2, w2)
    jax.block_until_ready(out2_arr)
    assert out2_arr.shape == (N2, out2)
    assert jnp.allclose(out2_arr, x2 @ w2.T, atol=1e-4, rtol=1e-4)

    print("KERNEL_OK")
</pallas_src>

<mosaic_0001>
module attributes {stable_mosaic.version = 11 : i64} {
  func.func @_full_k_kernel(%arg0: i32, %arg1: i32, %arg2: memref<128x128xf32, #tpu.memory_space<vmem>>, %arg3: memref<128x128xf32, #tpu.memory_space<vmem>>, %arg4: memref<128x128xf32, #tpu.memory_space<vmem>>) attributes {dimension_semantics = [#tpu.dimension_semantics<parallel>, #tpu.dimension_semantics<parallel>], iteration_bounds = array<i64: 2, 1>, scalar_prefetch = 0 : i64, scratch_operands = 0 : i64, tpu.core_type = #tpu.core_type<tc>, window_params = [{transform_indices = @transform_0, window_bounds = array<i64: 128, 128>}, {transform_indices = @transform_1, window_bounds = array<i64: 128, 128>}, {transform_indices = @transform_2, window_bounds = array<i64: 128, 128>}]} {
    %c0 = arith.constant 0 : index
    %c0_0 = arith.constant 0 : index
    %0 = vector.load %arg2[%c0, %c0_0] : memref<128x128xf32, #tpu.memory_space<vmem>>, vector<128x128xf32>
    %c0_1 = arith.constant 0 : index
    %c0_2 = arith.constant 0 : index
    %1 = vector.load %arg3[%c0_1, %c0_2] : memref<128x128xf32, #tpu.memory_space<vmem>>, vector<128x128xf32>
    %cst = arith.constant dense<0.000000e+00> : vector<128x128xf32>
    %2 = tpu.matmul %0, %1, %cst {dimension_numbers = #tpu.dot_dimension_numbers<[1], [1], [0], [0], [0, 0, 1, 0], [], []>} : vector<128x128xf32>, vector<128x128xf32>, vector<128x128xf32> -> vector<128x128xf32>
    %c0_3 = arith.constant 0 : index
    %c0_4 = arith.constant 0 : index
    %3 = vector.load %arg4[%c0_3, %c0_4] : memref<128x128xf32, #tpu.memory_space<vmem>>, vector<128x128xf32>
    tpu.vector_store %arg4[%c0_3, %c0_4], %2 {strides = array<i32>} : memref<128x128xf32, #tpu.memory_space<vmem>>, vector<128x128xf32>,
    return
  }
  func.func @transform_0(%arg0: i32, %arg1: i32) -> (i32, i32) {
    %c0_i32 = arith.constant 0 : i32
    %c0_i32_0 = arith.constant 0 : i32
    return %arg0, %c0_i32 : i32, i32
  }
  func.func @transform_1(%arg0: i32, %arg1: i32) -> (i32, i32) {
    %c0_i32 = arith.constant 0 : i32
    %c0_i32_0 = arith.constant 0 : i32
    return %arg1, %c0_i32 : i32, i32
  }
  func.func @transform_2(%arg0: i32, %arg1: i32) -> (i32, i32) {
    %c0_i32 = arith.constant 0 : i32
    return %arg0, %arg1 : i32, i32
  }
}

</mosaic_0001>

<llo_original>
// kernel: tpu_custom_call.1
$region0: #{tpu_custom_call.1}
  #allocation0 [shape = 'u32[]', space=smem, size = 0x4, offset = 0x4, fixed_abs, tag = 'smem constant byte address 0x4 - core index']
  #allocation1 [shape = 'u32[144,128]{1,0:T(1,128)}', space=vmem, size = 0x12000, scoped, tag = 'internal scratch']
  %s0 = inlined_call_operand.hbm [shape: f32[256,128], index: 0, kind: input, shape index: {}]
  %s1 = inlined_call_operand.hbm [shape: f32[128,128], index: 1, kind: input, shape index: {}]
  %s2 = inlined_call_operand.hbm [shape: f32[256,128], index: 2, kind: output, shape index: {}]
  %s3 = sld [smem:[#allocation0]]
  $region49: #{tpu_custom_call.1} parent=0
    _
  %s5 = ssub.s32 1, %s3
  %s6 = scalar_select 0, %s5, %s3
  $region1: #{tpu_custom_call.1} parent=0
    #allocation2 [shape = 'u8[131072]{0}', space=vmem, size = 0x20000, scoped, tag = 'input window, operand 0']
    #allocation3 [shape = 's32[2]{0}', space=sflag, size = 0x8, scoped, tag = 'scoped memory for tpu_custom_call.1']
    #allocation4 [shape = 's32[2]{0}', space=sflag, size = 0x8, scoped, tag = 'scoped memory for tpu_custom_call.1']
    #allocation5 [shape = 'u8[65536]{0}', space=vmem, size = 0x10000, scoped, tag = 'input window, operand 1, single buffered']
    #allocation6 [shape = 's32[1]{0}', space=sflag, size = 0x4, scoped, tag = 'scoped memory for tpu_custom_call.1']
    #allocation7 [shape = 'u8[131072]{0}', space=vmem, size = 0x20000, scoped, tag = 'output window, operand 0']
    %7 = vsyncpa [#allocation3], 0
    %s8 = scalar_lea.sflag [#allocation3], 1
    %9 = vsyncpa %s8, 0
    %10 = vsyncpa [#allocation6], 0
    %11 = vsyncpa [#allocation4], 0
    %s12 = scalar_lea.sflag [#allocation4], 1
    %13 = vsyncpa %s12, 0
    loop: start=0, step=1, limit=4
    $region2: #{tpu_custom_call.1} parent=1 // loop_pre_header
      _
    $region3: #{tpu_custom_call.1} parent=1 // loop_header
      %s15 = sphi 0, %s19
      %p16 = scmp.ge.s32.totalorder %s15, 4
      %s22 = sphi 0, %s34
      %s23 = sphi 0, %s30
      %s24 = sphi 0, %s22
      %s25 = sphi 0, %s23
      %s26 = sphi 0, %s24
      %s27 = sphi 0, %s25
      %s37 = sphi 0, %s39
      %s40 = sphi 0, %s37
      %s41 = sphi 0, %s40
      %s57 = sphi 0, %s41
      %s63 = sphi 0, %s65
      %s66 = sphi 0, %s63
      %s67 = sphi 0, %s66
      %s83 = sphi 0, %s67
      %s91 = sphi 0, %s93
      %s94 = sphi 0, %s91
      %s95 = sphi 0, %s94
      %s111 = sphi 0, %s95
    $region4: #{tpu_custom_call.1} parent=1 // loop_header_branch
      %18 = sbr.rel (%p16) target = $region8
    $region5: #{tpu_custom_call.1} parent=1 // loop_body
      %s20 = ssub.s32 %s15, 1
      %s21 = ssub.s32 %s15, 2
      %s28 = sadd.s32 1, %s23
      %p29 = scmp.ge.s32.totalorder %s28, 1
      %s30 = scalar_select %p29, 0, %s28
      %s31 = sadd.s32 1, %s22
      %s32 = scalar_select %p29, %s31, %s22
      %p33 = scmp.ge.s32.totalorder %s32, 2
      %s34 = scalar_select %p33, 0, %s32
      %s35 = ssub.s32 %s22, %s34
      %p36 = scmp.eq.s32.totalorder %s35, 0
      %s38 = sadd.s32 %s37, 1
      %s39 = scalar_select %p36, %s37, %s38
      %p42 = pneg %p36
      %p43 = scmp.eq.s32.totalorder %s15, 1
      %p44 = por %p42, %p43
      %p45 = scmp.ne.s32.totalorder %s37, %s40
      %p46 = scmp.eq.s32.totalorder %s15, 0
      %p47 = por %p45, %p46
      %p48 = scmp.ne.s32.totalorder %s37, %s40
      %p49 = scmp.eq.s32.totalorder %s20, 1
      %p50 = por %p48, %p49
      %p51 = scmp.ne.s32.totalorder %s40, %s41
      %p52 = scmp.eq.s32.totalorder %s20, 0
      %p53 = por %p51, %p52
      %p54 = scmp.ne.s32.totalorder %s40, %s41
      %p55 = scmp.eq.s32.totalorder %s21, 1
      %p56 = por %p54, %p55
      %p58 = scmp.ne.s32.totalorder %s41, %s57
      %p59 = scmp.eq.s32.totalorder %s21, 0
      %p60 = por %p58, %p59
      %s61 = ssub.s32 %s23, %s30
      %p62 = scmp.eq.s32.totalorder %s61, 0
      %s64 = sadd.s32 %s63, 1
      %s65 = scalar_select %p62, %s63, %s64
      %p68 = pneg %p62
      %p69 = scmp.eq.s32.totalorder %s15, 1
      %p70 = por %p68, %p69
      %p71 = scmp.ne.s32.totalorder %s63, %s66
      %p72 = scmp.eq.s32.totalorder %s15, 0
      %p73 = por %p71, %p72
      %p74 = scmp.ne.s32.totalorder %s63, %s66
      %p75 = scmp.eq.s32.totalorder %s20, 1
      %p76 = por %p74, %p75
      %p77 = scmp.ne.s32.totalorder %s66, %s67
      %p78 = scmp.eq.s32.totalorder %s20, 0
      %p79 = por %p77, %p78
      %p80 = scmp.ne.s32.totalorder %s66, %s67
      %p81 = scmp.eq.s32.totalorder %s21, 1
      %p82 = por %p80, %p81
      %p84 = scmp.ne.s32.totalorder %s67, %s83
      %p85 = scmp.eq.s32.totalorder %s21, 0
      %p86 = por %p84, %p85
      %s87 = ssub.s32 %s22, %s34
      %s88 = ssub.s32 %s23, %s30
      %s89 = sor.u32 %s87, %s88
      %p90 = scmp.eq.s32.totalorder %s89, 0
      %s92 = sadd.s32 %s91, 1
      %s93 = scalar_select %p90, %s91, %s92
      %p96 = pneg %p90
      %p97 = scmp.eq.s32.totalorder %s15, 1
      %p98 = por %p96, %p97
      %p99 = scmp.ne.s32.totalorder %s91, %s94
      %p100 = scmp.eq.s32.totalorder %s15, 0
      %p101 = por %p99, %p100
      %p102 = scmp.ne.s32.totalorder %s91, %s94
      %p103 = scmp.eq.s32.totalorder %s20, 1
      %p104 = por %p102, %p103
      %p105 = scmp.ne.s32.totalorder %s94, %s95
      %p106 = scmp.eq.s32.totalorder %s20, 0
      %p107 = por %p105, %p106
      %p108 = scmp.ne.s32.totalorder %s94, %s95
      %p109 = scmp.eq.s32.totalorder %s21, 1
      %p110 = por %p108, %p109
      %p112 = scmp.ne.s32.totalorder %s95, %s111
      %p113 = scmp.eq.s32.totalorder %s21, 0
      %p114 = por %p112, %p113
      %p115 = scmp.le.s32.totalorder 1, %s15
      %p116 = scmp.lt.s32.totalorder %s15, 3
      %p117 = pnand %p115, %p116
      %p118 = pneg %p117
      // Predicated region
      $region9: #{tpu_custom_call.1} parent=5 // pred_check
        _
      $region10: #{tpu_custom_call.1} parent=5 // pred_check_branch
        %120 = sbr.rel (%p117) target = $region12
      $region11: #{tpu_custom_call.1} parent=5 // pred_region
        %s121 = ssub.s32 %s15, 1
        // Predicated region
        $region13: #{tpu_custom_call.1} parent=11 // pred_check
          %p122 = pneg %p79
        $region14: #{tpu_custom_call.1} parent=11 // pred_check_branch
          %124 = sbr.rel (%p122) target = $region16
        $region15: #{tpu_custom_call.1} parent=11 // pred_region
          %s125 = smul.u32 16, %s25
          %s127 = ssub.s32 2048, 2048
          %128 = vsyncadd [#allocation6], %s127
          %s129 = smul.addr %s125, 128
          %s130 = scalar_lea.hbm %s1, %s129
          %s131 = sshll.u32 [#allocation5], 4
          %s132 = int_to_ptr.vmem [resolvable:$true] %s131
          %137 = dma.hbm_to_vmem [thread:$0]  %s130, 2048, %s132, [#allocation6], 128, 128, 8
        $region16: #{tpu_custom_call.1} parent=11 // pred_fallthru
          _
      $region12: #{tpu_custom_call.1} parent=5 // pred_fallthru
        _
      %p138 = scmp.lt.s32.totalorder %s15, 2
      // Predicated region
      $region17: #{tpu_custom_call.1} parent=5 // pred_check
        %p139 = pneg %p138
      $region18: #{tpu_custom_call.1} parent=5 // pred_check_branch
        %141 = sbr.rel (%p139) target = $region20
      $region19: #{tpu_custom_call.1} parent=5 // pred_region
        // Predicated region
        $region21: #{tpu_custom_call.1} parent=19 // pred_check
          %p142 = pneg %p47
        $region22: #{tpu_custom_call.1} parent=19 // pred_check_branch
          %144 = sbr.rel (%p142) target = $region24
        $region23: #{tpu_custom_call.1} parent=19 // pred_region
          %s145 = sand.u32 %s37, 1
          %s146 = scalar_lea.sflag [#allocation3], %s145
          %s147 = sand.u32 %s37, 1
          %s148 = smul.addr %s147, 128
          %s149 = scalar_lea.vmem [#allocation2], %s148
          %s150 = smul.u32 16, %s22
          %s152 = ssub.s32 2048, 2048
          %153 = vsyncadd %s146, %s152
          %s154 = smul.addr %s150, 128
          %s155 = scalar_lea.hbm %s0, %s154
          %s156 = sshll.u32 %s149, 4
          %s157 = int_to_ptr.vmem [resolvable:$true] %s156
          %162 = dma.hbm_to_vmem [thread:$0]  %s155, 2048, %s157, %s146, 128, 128, 8
        $region24: #{tpu_custom_call.1} parent=19 // pred_fallthru
          _
      $region20: #{tpu_custom_call.1} parent=5 // pred_fallthru
        _
      %p163 = scmp.le.s32.totalorder 1, %s15
      %p164 = scmp.lt.s32.totalorder %s15, 3
      %p165 = pnand %p163, %p164
      %p166 = pneg %p165
      // Predicated region
      $region25: #{tpu_custom_call.1} parent=5 // pred_check
        _
      $region26: #{tpu_custom_call.1} parent=5 // pred_check_branch
        %168 = sbr.rel (%p165) target = $region28
      $region27: #{tpu_custom_call.1} parent=5 // pred_region
        %s169 = ssub.s32 %s15, 1
        %s170 = sand.u32 %s40, 1
        %s171 = scalar_lea.sflag [#allocation3], %s170
        %s172 = sand.u32 %s40, 1
        %s173 = smul.addr %s172, 128
        %s174 = scalar_lea.vmem [#allocation2], %s173
        // Predicated region
        $region29: #{tpu_custom_call.1} parent=27 // pred_check
          %p175 = pneg %p53
        $region30: #{tpu_custom_call.1} parent=27 // pred_check_branch
          %177 = sbr.rel (%p175) target = $region32
        $region31: #{tpu_custom_call.1} parent=27 // pred_region
          %178 = dma.done %s171, 2048
        $region32: #{tpu_custom_call.1} parent=27 // pred_fallthru
          _
        // Predicated region
        $region33: #{tpu_custom_call.1} parent=27 // pred_check
          %p179 = pneg %p79
        $region34: #{tpu_custom_call.1} parent=27 // pred_check_branch
          %181 = sbr.rel (%p179) target = $region36
        $region35: #{tpu_custom_call.1} parent=27 // pred_region
          %182 = dma.done [#allocation6], 2048
        $region36: #{tpu_custom_call.1} parent=27 // pred_fallthru
          _
        %s183 = sand.u32 %s40, 1
        %s184 = scalar_lea.sflag [#allocation3], %s183
        %s185 = sand.u32 %s40, 1
        %s186 = smul.addr %s185, 128
        %s187 = scalar_lea.vmem [#allocation2], %s186
        %p188 = pneg %p53
        %p189 = pneg %p50
        %p190 = pneg %p79
        %p191 = pneg %p76
        %p192 = pneg %p107
        %p193 = pneg %p104
        %s194 = sand.u32 %s94, 1
        %s195 = scalar_lea.sflag [#allocation4], %s194
        %s196 = sand.u32 %s94, 1
        %s197 = smul.addr %s196, 128
        %s198 = scalar_lea.vmem [#allocation7], %s197
        %s199 = smul.u32 16, %s24
        %s200 = smul.u32 16, %s25
        %s201 = smul.u32 16, %s24
        %v202 = vld [vmem:[%s174] sm:$0xff]
        %v203 = vld [vmem:[%s174 + $0x8] sm:$0xff]
        %v204 = vld [vmem:[%s174 + $0x10] sm:$0xff]
        %v205 = vld [vmem:[%s174 + $0x18] sm:$0xff]
        %v206 = vld [vmem:[%s174 + $0x20] sm:$0xff]
        %v207 = vld [vmem:[%s174 + $0x28] sm:$0xff]
        %v208 = vld [vmem:[%s174 + $0x30] sm:$0xff]
        %v209 = vld [vmem:[%s174 + $0x38] sm:$0xff]
        %v210 = vld [vmem:[%s174 + $0x40] sm:$0xff]
        %v211 = vld [vmem:[%s174 + $0x48] sm:$0xff]
        %v212 = vld [vmem:[%s174 + $0x50] sm:$0xff]
        %v213 = vld [vmem:[%s174 + $0x58] sm:$0xff]
        %v214 = vld [vmem:[%s174 + $0x60] sm:$0xff]
        %v215 = vld [vmem:[%s174 + $0x68] sm:$0xff]
        %v216 = vld [vmem:[%s174 + $0x70] sm:$0xff]
        %v217 = vld [vmem:[%s174 + $0x78] sm:$0xff]
        %v218 = vld [vmem:[#allocation5] sm:$0xff]
        %v219 = vld [vmem:[#allocation5 + $0x8] sm:$0xff]
        %v220 = vld [vmem:[#allocation5 + $0x10] sm:$0xff]
        %v221 = vld [vmem:[#allocation5 + $0x18] sm:$0xff]
        %v222 = vld [vmem:[#allocation5 + $0x20] sm:$0xff]
        %v223 = vld [vmem:[#allocation5 + $0x28] sm:$0xff]
        %v224 = vld [vmem:[#allocation5 + $0x30] sm:$0xff]
        %v225 = vld [vmem:[#allocation5 + $0x38] sm:$0xff]
        %v226 = vld [vmem:[#allocation5 + $0x40] sm:$0xff]
        %v227 = vld [vmem:[#allocation5 + $0x48] sm:$0xff]
        %v228 = vld [vmem:[#allocation5 + $0x50] sm:$0xff]
        %v229 = vld [vmem:[#allocation5 + $0x58] sm:$0xff]
        %v230 = vld [vmem:[#allocation5 + $0x60] sm:$0xff]
        %v231 = vld [vmem:[#allocation5 + $0x68] sm:$0xff]
        %v232 = vld [vmem:[#allocation5 + $0x70] sm:$0xff]
        %v233 = vld [vmem:[#allocation5 + $0x78] sm:$0xff]
        %234 = vmatprep.subr.mxu0 0.0
        %235 = vmatpush1.xpose.msra.mxu0 %v218
        %236 = vmatprep.subr.mxu0 0.0
        %237 = vmatpush1.xpose.msra.mxu0 %v219
        %238 = vmatprep.subr.mxu0 0.0
        %239 = vmatpush1.xpose.msra.mxu0 %v220
        %240 = vmatprep.subr.mxu0 0.0
        %241 = vmatpush1.xpose.msra.mxu0 %v221
        %242 = vmatprep.subr.mxu0 0.0
        %243 = vmatpush1.xpose.msra.mxu0 %v222
        %244 = vmatprep.subr.mxu0 0.0
        %245 = vmatpush1.xpose.msra.mxu0 %v223
        %246 = vmatprep.subr.mxu0 0.0
        %247 = vmatpush1.xpose.msra.mxu0 %v224
        %248 = vmatprep.subr.mxu0 0.0
        %249 = vmatpush1.xpose.msra.mxu0 %v225
        %250 = vmatprep.subr.mxu0 0.0
        %251 = vmatpush1.xpose.msra.mxu0 %v226
        %252 = vmatprep.subr.mxu0 0.0
        %253 = vmatpush1.xpose.msra.mxu0 %v227
        %254 = vmatprep.subr.mxu0 0.0
        %255 = vmatpush1.xpose.msra.mxu0 %v228
        %256 = vmatprep.subr.mxu0 0.0
        %257 = vmatpush1.xpose.msra.mxu0 %v229
        %258 = vmatprep.subr.mxu0 0.0
        %259 = vmatpush1.xpose.msra.mxu0 %v230
        %260 = vmatprep.subr.mxu0 0.0
        %261 = vmatpush1.xpose.msra.mxu0 %v231
        %262 = vmatprep.subr.mxu0 0.0
        %263 = vmatpush1.xpose.msra.mxu0 %v232
        %264 = vmatprep.subr.mxu0 0.0
        %265 = vmatpush1.xpose.msra.mxu0 %v233
        %266 = vmatprep.subr.mxu0 0.0
        %267 = vmatpush1.xpose.msra.mxu0 0.0
        %268 = vmatprep.subr.mxu0 0.0
        %269 = vmatpush1.xpose.msra.mxu0 0.0
        %270 = vmatprep.subr.mxu0 0.0
        %271 = vmatpush1.xpose.msra.mxu0 0.0
        %272 = vmatprep.subr.mxu0 0.0
        %273 = vmatpush1.xpose.msra.mxu0 0.0
        %274 = vmatprep.subr.mxu0 0.0
        %275 = vmatpush1.xpose.msra.mxu0 0.0
        %276 = vmatprep.subr.mxu0 0.0
        %277 = vmatpush1.xpose.msra.mxu0 0.0
        %278 = vmatprep.subr.mxu0 0.0
        %279 = vmatpush1.xpose.msra.mxu0 0.0
        %280 = vmatprep.subr.mxu0 0.0
        %281 = vmatpush1.xpose.msra.mxu0 0.0
        %282 = vmatprep.subr.mxu0 0.0
        %283 = vmatpush1.xpose.msra.mxu0 0.0
        %284 = vmatprep.subr.mxu0 0.0
        %285 = vmatpush1.xpose.msra.mxu0 0.0
        %286 = vmatprep.subr.mxu0 0.0
        %287 = vmatpush1.xpose.msra.mxu0 0.0
        %288 = vmatprep.subr.mxu0 0.0
        %289 = vmatpush1.xpose.msra.mxu0 0.0
        %290 = vmatprep.subr.mxu0 0.0
        %291 = vmatpush1.xpose.msra.mxu0 0.0
        %292 = vmatprep.subr.mxu0 0.0
        %293 = vmatpush1.xpose.msra.mxu0 0.0
        %294 = vmatprep.subr.mxu0 0.0
        %295 = vmatpush1.xpose.msra.mxu0 0.0
        %296 = vmatprep.subr.mxu0 0.0
        %297 = vmatpush1.xpose.msra.mxu0 0.0
        %298 = vmatprep.mubr.f32.mxu0 0.0
        %299 = vmatmul.mubr.f32.gmra.mrb[0].mxu0 %v202
        %v300 = vpop.f32.mrb[0].mxu0
        %v301 = vadd.f32 0.0, %v300
        %v302 = vpop.f32.mrb[0].mxu0
        %303 = vmatprep.mubr.f32.mxu0 0.0
        %304 = vmatmul.mubr.f32.gmra.mrb[0].mxu0 %v203
        %v305 = vpop.f32.mrb[0].mxu0
        %v306 = vadd.f32 0.0, %v305
        %v307 = vpop.f32.mrb[0].mxu0
        %308 = vmatprep.mubr.f32.mxu0 0.0
        %309 = vmatmul.mubr.f32.gmra.mrb[0].mxu0 %v204
        %v310 = vpop.f32.mrb[0].mxu0
        %v311 = vadd.f32 0.0, %v310
        %v312 = vpop.f32.mrb[0].mxu0
        %313 = vmatprep.mubr.f32.mxu0 0.0
        %314 = vmatmul.mubr.f32.gmra.mrb[0].mxu0 %v205
        %v315 = vpop.f32.mrb[0].mxu0
        %v316 = vadd.f32 0.0, %v315
        %v317 = vpop.f32.mrb[0].mxu0
        %318 = vmatprep.mubr.f32.mxu0 0.0
        %319 = vmatmul.mubr.f32.gmra.mrb[0].mxu0 %v206
        %v320 = vpop.f32.mrb[0].mxu0
        %v321 = vadd.f32 0.0, %v320
        %v322 = vpop.f32.mrb[0].mxu0
        %323 = vmatprep.mubr.f32.mxu0 0.0
        %324 = vmatmul.mubr.f32.gmra.mrb[0].mxu0 %v207
        %v325 = vpop.f32.mrb[0].mxu0
        %v326 = vadd.f32 0.0, %v325
        %v327 = vpop.f32.mrb[0].mxu0
        %328 = vmatprep.mubr.f32.mxu0 0.0
        %329 = vmatmul.mubr.f32.gmra.mrb[0].mxu0 %v208
        %v330 = vpop.f32.mrb[0].mxu0
        %v331 = vadd.f32 0.0, %v330
        %v332 = vpop.f32.mrb[0].mxu0
        %333 = vmatprep.mubr.f32.mxu0 0.0
        %334 = vmatmul.mubr.f32.gmra.mrb[0].mxu0 %v209
        %v335 = vpop.f32.mrb[0].mxu0
        %v336 = vadd.f32 0.0, %v335
        %v337 = vpop.f32.mrb[0].mxu0
        %338 = vmatprep.mubr.f32.mxu0 0.0
        %339 = vmatmul.mubr.f32.gmra.mrb[0].mxu0 %v210
        %v340 = vpop.f32.mrb[0].mxu0
        %v341 = vadd.f32 0.0, %v340
        %v342 = vpop.f32.mrb[0].mxu0
        %343 = vmatprep.mubr.f32.mxu0 0.0
        %344 = vmatmul.mubr.f32.gmra.mrb[0].mxu0 %v211
        %v345 = vpop.f32.mrb[0].mxu0
        %v346 = vadd.f32 0.0, %v345
        %v347 = vpop.f32.mrb[0].mxu0
        %348 = vmatprep.mubr.f32.mxu0 0.0
        %349 = vmatmul.mubr.f32.gmra.mrb[0].mxu0 %v212
        %v350 = vpop.f32.mrb[0].mxu0
        %v351 = vadd.f32 0.0, %v350
        %v352 = vpop.f32.mrb[0].mxu0
        %353 = vmatprep.mubr.f32.mxu0 0.0
        %354 = vmatmul.mubr.f32.gmra.mrb[0].mxu0 %v213
        %v355 = vpop.f32.mrb[0].mxu0
        %v356 = vadd.f32 0.0, %v355
        %v357 = vpop.f32.mrb[0].mxu0
        %358 = vmatprep.mubr.f32.mxu0 0.0
        %359 = vmatmul.mubr.f32.gmra.mrb[0].mxu0 %v214
        %v360 = vpop.f32.mrb[0].mxu0
        %v361 = vadd.f32 0.0, %v360
        %v362 = vpop.f32.mrb[0].mxu0
        %363 = vmatprep.mubr.f32.mxu0 0.0
        %364 = vmatmul.mubr.f32.gmra.mrb[0].mxu0 %v215
        %v365 = vpop.f32.mrb[0].mxu0
        %v366 = vadd.f32 0.0, %v365
        %v367 = vpop.f32.mrb[0].mxu0
        %368 = vmatprep.mubr.f32.mxu0 0.0
        %369 = vmatmul.mubr.f32.gmra.mrb[0].mxu0 %v216
        %v370 = vpop.f32.mrb[0].mxu0
        %v371 = vadd.f32 0.0, %v370
        %v372 = vpop.f32.mrb[0].mxu0
        %373 = vmatprep.mubr.f32.mxu0 0.0
        %374 = vmatmul.mubr.f32.gmra.mrb[0].mxu0 %v217
        %v375 = vpop.f32.mrb[0].mxu0
        %v376 = vadd.f32 0.0, %v375
        %v377 = vpop.f32.mrb[0].mxu0
        %378 = vdwg.mxu0
        %379 = vst [vmem:[%s198] sm:$0xff] %v301
        %380 = vst [vmem:[%s198 + $0x8] sm:$0xff] %v306
        %381 = vst [vmem:[%s198 + $0x10] sm:$0xff] %v311
        %382 = vst [vmem:[%s198 + $0x18] sm:$0xff] %v316
        %383 = vst [vmem:[%s198 + $0x20] sm:$0xff] %v321
        %384 = vst [vmem:[%s198 + $0x28] sm:$0xff] %v326
        %385 = vst [vmem:[%s198 + $0x30] sm:$0xff] %v331
        %386 = vst [vmem:[%s198 + $0x38] sm:$0xff] %v336
        %387 = vst [vmem:[%s198 + $0x40] sm:$0xff] %v341
        %388 = vst [vmem:[%s198 + $0x48] sm:$0xff] %v346
        %389 = vst [vmem:[%s198 + $0x50] sm:$0xff] %v351
        %390 = vst [vmem:[%s198 + $0x58] sm:$0xff] %v356
        %391 = vst [vmem:[%s198 + $0x60] sm:$0xff] %v361
        %392 = vst [vmem:[%s198 + $0x68] sm:$0xff] %v366
        %393 = vst [vmem:[%s198 + $0x70] sm:$0xff] %v371
        %394 = vst [vmem:[%s198 + $0x78] sm:$0xff] %v376
        %s395 = sand.u32 %s94, 1
        %s396 = scalar_lea.sflag [#allocation4], %s395
        %s397 = sand.u32 %s94, 1
        %s398 = smul.addr %s397, 128
        %s399 = scalar_lea.vmem [#allocation7], %s398
        // Predicated region
        $region37: #{tpu_custom_call.1} parent=27 // pred_check
          %p400 = pneg %p104
        $region38: #{tpu_custom_call.1} parent=27 // pred_check_branch
          %402 = sbr.rel (%p400) target = $region40
        $region39: #{tpu_custom_call.1} parent=27 // pred_region
          %s403 = smul.u32 16, %s24
          %s405 = ssub.s32 2048, 2048
          %406 = vsyncadd %s396, %s405
          %s407 = sadd.s32 %s25, %s403
          %s408 = smul.addr %s407, 128
          %s409 = scalar_lea.hbm %s2, %s408
          %s410 = sshll.u32 %s399, 4
          %s411 = int_to_ptr.vmem [resolvable:$true] %s410
          %416 = dma.vmem_to_hbm [thread:$0]  %s411, 2048, %s409, %s396, 128, 128, 8
        $region40: #{tpu_custom_call.1} parent=27 // pred_fallthru
          _
      $region28: #{tpu_custom_call.1} parent=5 // pred_fallthru
        _
      %p417 = scmp.le.s32.totalorder 2, %s15
      // Predicated region
      $region41: #{tpu_custom_call.1} parent=5 // pred_check
        %p418 = pneg %p417
      $region42: #{tpu_custom_call.1} parent=5 // pred_check_branch
        %420 = sbr.rel (%p418) target = $region44
      $region43: #{tpu_custom_call.1} parent=5 // pred_region
        %s421 = ssub.s32 %s15, 2
        // Predicated region
        $region45: #{tpu_custom_call.1} parent=43 // pred_check
          %p422 = pneg %p110
        $region46: #{tpu_custom_call.1} parent=43 // pred_check_branch
          %424 = sbr.rel (%p422) target = $region48
        $region47: #{tpu_custom_call.1} parent=43 // pred_region
          %s425 = sand.u32 %s95, 1
          %s426 = scalar_lea.sflag [#allocation4], %s425
          %s427 = sand.u32 %s95, 1
          %s428 = smul.addr %s427, 128
          %s429 = scalar_lea.vmem [#allocation7], %s428
          %430 = dma.done %s426, 2048
        $region48: #{tpu_custom_call.1} parent=43 // pred_fallthru
          _
      $region44: #{tpu_custom_call.1} parent=5 // pred_fallthru
        _
    $region6: #{tpu_custom_call.1} parent=1 // loop_footer
      %s19 = sadd.s32 1, %s15
    $region7: #{tpu_custom_call.1} parent=1 // loop_footer_branch
      %14 = sbr.rel target = $region3
    $region8: #{tpu_custom_call.1} parent=1 // loop_exit
      _
    %431 = vsyncpa [#allocation3], 1
    %s432 = scalar_lea.sflag [#allocation3], 1
    %433 = vsyncpa %s432, 1
    %434 = vsyncpa [#allocation6], 1
    %435 = vsyncpa [#allocation4], 1
    %s436 = scalar_lea.sflag [#allocation4], 1
    %437 = vsyncpa %s436, 1

</llo_original>
